<compile_context>
chip_gen: v6e
topology: v6e:2x2x1
jax: 0.10.0
libtpu: 0.0.40
codegen_flags: <defaults>
</compile_context>

<pallas_src>
import jax
import jax.numpy as jnp
from jax.experimental import pallas as pl
from jax.experimental.pallas import tpu as pltpu


def _round_up(n, m):
    return ((n + m - 1) // m) * m


def _pick_batch_tile(B, cap=8):
    """Largest divisor of B that is <= cap and (when possible) leaves >= 2 grid
    steps so both v7x TensorCores get work."""
    divisors = [d for d in range(1, min(B, cap) + 1) if B % d == 0]
    multi = [d for d in divisors if B // d >= 2]
    return max(multi) if multi else max(divisors)


def _tdcn_kernel(xcol_ref, w_col_ref, w_shr_ref, aux_ref, o_ref):
    # xcol_ref:  (Bt, T_out_p, K*C_in)      bf16  pre-im2col'd input tile
    # w_col_ref: (K*C_in, H_p)              bf16  im2col expand-conv weight
    # w_shr_ref: (H_p, C_out_p)             bf16  1x1 shrink-conv weight
    # aux_ref:   (3, P)                     f32   [bn_scale | bn_shift(+bias) | b_shrink]
    # o_ref:     (Bt, T_out_p, C_out_p)     bf16
    Bt, T_out_p, KC = xcol_ref.shape
    H_p = w_col_ref.shape[1]
    C_out_p = o_ref.shape[2]

    # Merge (Bt, T_out_p) -> rows; layout-free (T_out_p % 16 == 0, lane dim unchanged).
    x_col = xcol_ref[...].reshape(Bt * T_out_p, KC)

    # Expand conv == ONE MXU matmul (bf16 operands, f32 accumulation).
    acc = jnp.dot(x_col, w_col_ref[...], preferred_element_type=jnp.float32)

    # Fused eval-mode BatchNorm (expand-conv bias already folded into shift) + ReLU,
    # f32 epilogue (v5e has no bf16 VPU).
    acc = jnp.maximum(acc * aux_ref[0:1, :H_p] + aux_ref[1:2, :H_p], 0.0)

    # 1x1 shrink conv == second MXU matmul + bias.
    out = jnp.dot(acc.astype(w_shr_ref.dtype), w_shr_ref[...],
                  preferred_element_type=jnp.float32)
    out = out + aux_ref[2:3, :C_out_p]

    # Single lane-dense, sublane-aligned store (layout-free reshape).
    o_ref[...] = out.astype(o_ref.dtype).reshape(Bt, T_out_p, C_out_p)


def pack_params(params):
    """One-time parameter packing (pad + bf16 cast + bias fold). Call at load time."""
    w_exp = params["w_expand"]                       # (K, C_in, H)
    K, C_in, H = w_exp.shape
    C_out = params["w_shrink"].shape[1]
    H_p = _round_up(H, 128)                          # lane-dense hidden
    C_out_p = _round_up(C_out, 128)                  # lane-dense output
    P = max(H_p, C_out_p)

    w_col = (jnp.zeros((K * C_in, H_p), jnp.float32)
             .at[:, :H].set(w_exp.reshape(K * C_in, H))
             .astype(jnp.bfloat16))
    w_shr = (jnp.zeros((H_p, C_out_p), jnp.float32)
             .at[:H, :C_out].set(params["w_shrink"])
             .astype(jnp.bfloat16))

    # Fold expand-conv bias into the fused BN shift; pack per-channel vectors into
    # one (3, P) operand -> single DMA descriptor.
    bn_scale = params["bn_scale"].reshape(H)
    bn_shift = (params["bn_shift"] + params["b_expand"] * params["bn_scale"]).reshape(H)
    b_shr = params["b_shrink"].reshape(C_out)
    aux = (jnp.zeros((3, P), jnp.float32)
           .at[0, :H].set(bn_scale)
           .at[1, :H].set(bn_shift)
           .at[2, :C_out].set(b_shr))

    return {"w_col": w_col, "w_shr": w_shr, "aux": aux,
            "K": K, "C_in": C_in, "H": H, "C_out": C_out}


def temporal_model_forward(x, packed, *, batch_tile=None, batch_tile_cap=8):
    """x: (B, T, in_features) float32. Returns (B, T - fw0 + 1, out_features) f32."""
    assert x.ndim == 3
    B, T, C_in = x.shape
    assert C_in == packed["C_in"]
    K = packed["K"]
    C_out = packed["C_out"]
    w_col, w_shr, aux = packed["w_col"], packed["w_shr"], packed["aux"]
    KC, H_p = w_col.shape
    C_out_p = w_shr.shape[1]
    P = aux.shape[1]

    T_out = T - K + 1
    assert T_out >= 1
    # Multiple of 16 so bf16 sublane packing of both x_col and the output is dense.
    T_out_p = _round_up(T_out, 16)
    T_p = T_out_p + K - 1

    if batch_tile is None:
        batch_tile = _pick_batch_tile(B, cap=batch_tile_cap)
    B_p = _round_up(B, batch_tile)

    # ---- im2col done ONCE in the wrapper (XLA), stored bf16 ----
    x_pad = (jnp.zeros((B_p, T_p, C_in), jnp.bfloat16)
             .at[:B, :T, :].set(x.astype(jnp.bfloat16)))
    x_col = jnp.concatenate([x_pad[:, k:k + T_out_p, :] for k in range(K)],
                            axis=-1)                 # (B_p, T_out_p, K*C_in)

    grid = (B_p // batch_tile,)
    grid_spec = pltpu.PrefetchScalarGridSpec(
        num_scalar_prefetch=0,
        grid=grid,
        in_specs=[
            pl.BlockSpec((batch_tile, T_out_p, KC), lambda b: (b, 0, 0)),
            pl.BlockSpec((KC, H_p), lambda b: (0, 0)),
            pl.BlockSpec((H_p, C_out_p), lambda b: (0, 0)),
            pl.BlockSpec((3, P), lambda b: (0, 0)),
        ],
        out_specs=pl.BlockSpec((batch_tile, T_out_p, C_out_p),
                               lambda b: (b, 0, 0)),
    )

    flops = 2 * B_p * T_out_p * (KC * H_p + H_p * C_out_p)
    bytes_accessed = (x_col.size * 2 + w_col.size * 2 + w_shr.size * 2
                      + aux.size * 4 + B_p * T_out_p * C_out_p * 2)
    cost = pl.CostEstimate(flops=flops, transcendentals=0,
                           bytes_accessed=bytes_accessed)

    out_p = pl.pallas_call(
        _tdcn_kernel,
        out_shape=jax.ShapeDtypeStruct((B_p, T_out_p, C_out_p), jnp.bfloat16),
        grid_spec=grid_spec,
        compiler_params=pltpu.CompilerParams(
            dimension_semantics=("parallel",),
            # Headroom under v7x's 64 MiB physical VMEM; well within v5e/v6e's 128 MiB.
            vmem_limit_bytes=48 * 1024 * 1024),
        cost_estimate=cost,
    )(x_col, w_col, w_shr, aux)

    return out_p[:B, :T_out, :C_out].astype(jnp.float32)


def _reference_forward(x, params):
    """Plain-JAX reference mirroring the kernel numerics (bf16 inputs / MXU operands,
    f32 accumulation, f32 epilogue, bf16 output) and PyTorch eval-mode semantics."""
    w_exp = params["w_expand"]                       # (K, C_in, H)
    K, _, H = w_exp.shape
    T_out = x.shape[1] - K + 1
    x_b = x.astype(jnp.bfloat16)
    w_b = w_exp.astype(jnp.bfloat16)
    acc = jnp.zeros((x.shape[0], T_out, H), jnp.float32)
    for k in range(K):
        acc = acc + jnp.einsum("btc,ch->bth", x_b[:, k:k + T_out, :], w_b[k],
                               preferred_element_type=jnp.float32)
    acc = acc + params["b_expand"][None]
    acc = acc * params["bn_scale"][None] + params["bn_shift"][None]
    acc = jnp.maximum(acc, 0.0)
    out = jnp.einsum("bth,ho->bto", acc.astype(jnp.bfloat16),
                     params["w_shrink"].astype(jnp.bfloat16),
                     preferred_element_type=jnp.float32)
    out = out + params["b_shrink"][None]
    return out.astype(jnp.bfloat16).astype(jnp.float32)


def init_params(key, in_features, filter_widths, out_features, hidden):
    for fw in filter_widths:
        assert fw % 2 != 0, "Only odd filter widths are supported"
    fw0 = filter_widths[0]
    k1, k2, k3, k4, k5, k6 = jax.random.split(key, 6)
    w_expand = 0.1 * jax.random.normal(k1, (fw0, in_features, hidden), jnp.float32)
    b_expand = 0.1 * jax.random.normal(k2, (1, hidden), jnp.float32)
    # Fused eval-mode BatchNorm: scale = gamma/sqrt(var+eps), shift = beta - mean*scale
    gamma = 1.0 + 0.05 * jax.random.normal(k3, (1, hidden), jnp.float32)
    beta = 0.05 * jax.random.normal(k4, (1, hidden), jnp.float32)
    running_mean = jnp.zeros((1, hidden), jnp.float32)
    running_var = jnp.ones((1, hidden), jnp.float32)
    eps = 1e-5
    bn_scale = gamma / jnp.sqrt(running_var + eps)
    bn_shift = beta - running_mean * bn_scale
    w_shrink = 0.1 * jax.random.normal(k5, (hidden, out_features), jnp.float32)
    b_shrink = 0.1 * jax.random.normal(k6, (1, out_features), jnp.float32)
    return {
        "w_expand": w_expand, "b_expand": b_expand,
        "bn_scale": bn_scale, "bn_shift": bn_shift,
        "w_shrink": w_shrink, "b_shrink": b_shrink,
    }


if __name__ == "__main__":
    in_features = 4
    out_features = 6
    hidden = 32
    filter_widths = [3]
    B, T = 2, 16

    key = jax.random.PRNGKey(0)
    kx, kp = jax.random.split(key)
    x = jax.random.normal(kx, (B, T, in_features), jnp.float32)
    params = init_params(kp, in_features, filter_widths, out_features, hidden)

    packed = pack_params(params)               # one-time packing (load-time)
    out = temporal_model_forward(x, packed)
    out = jax.block_until_ready(out)

    ref = _reference_forward(x, params)
    assert out.shape == (B, T - filter_widths[0] + 1, out_features), out.shape
    assert jnp.allclose(out, ref, atol=1e-2, rtol=1e-2), "mismatch vs reference"

    print("KERNEL_OK")
</pallas_src>

<mosaic_0001>
module attributes {stable_mosaic.version = 11 : i64} {
  func.func @_tdcn_kernel(%arg0: i32, %arg1: memref<1x16x12xbf16, #tpu.memory_space<vmem>>, %arg2: memref<12x128xbf16, #tpu.memory_space<vmem>>, %arg3: memref<128x128xbf16, #tpu.memory_space<vmem>>, %arg4: memref<3x128xf32, #tpu.memory_space<vmem>>, %arg5: memref<1x16x128xbf16, #tpu.memory_space<vmem>>) attributes {dimension_semantics = [#tpu.dimension_semantics<parallel>], iteration_bounds = array<i64: 2>, scalar_prefetch = 0 : i64, scratch_operands = 0 : i64, tpu.core_type = #tpu.core_type<tc>, window_params = [{transform_indices = @transform_0, window_bounds = array<i64: 1, 16, 12>}, {pipeline_mode = #tpu.pipeline_mode<synchronous>, transform_indices = @transform_1, window_bounds = array<i64: 12, 128>}, {pipeline_mode = #tpu.pipeline_mode<synchronous>, transform_indices = @transform_2, window_bounds = array<i64: 128, 128>}, {pipeline_mode = #tpu.pipeline_mode<synchronous>, transform_indices = @transform_3, window_bounds = array<i64: 3, 128>}, {transform_indices = @transform_4, window_bounds = array<i64: 1, 16, 128>}]} {
    %c0 = arith.constant 0 : index
    %c0_0 = arith.constant 0 : index
    %c0_1 = arith.constant 0 : index
    %0 = vector.load %arg1[%c0, %c0_0, %c0_1] : memref<1x16x12xbf16, #tpu.memory_space<vmem>>, vector<1x16x12xbf16>
    %1 = vector.shape_cast %0 : vector<1x16x12xbf16> to vector<16x12xbf16>
    %c0_2 = arith.constant 0 : index
    %c0_3 = arith.constant 0 : index
    %2 = vector.load %arg2[%c0_2, %c0_3] : memref<12x128xbf16, #tpu.memory_space<vmem>>, vector<12x128xbf16>
    %cst = arith.constant dense<0.000000e+00> : vector<16x128xf32>
    %3 = tpu.matmul %1, %2, %cst {dimension_numbers = #tpu.dot_dimension_numbers<[1], [0], [0], [1], [0, 0, 1, 1], [], []>} : vector<16x12xbf16>, vector<12x128xbf16>, vector<16x128xf32> -> vector<16x128xf32>
    %c0_4 = arith.constant 0 : index
    %c0_5 = arith.constant 0 : index
    %4 = vector.load %arg4[%c0_4, %c0_5] : memref<3x128xf32, #tpu.memory_space<vmem>>, vector<1x128xf32>
    %5 = vector.broadcast %4 : vector<1x128xf32> to vector<16x128xf32>
    %6 = arith.mulf %3, %5 : vector<16x128xf32>
    %c1 = arith.constant 1 : index
    %c0_6 = arith.constant 0 : index
    %7 = vector.load %arg4[%c1, %c0_6] : memref<3x128xf32, #tpu.memory_space<vmem>>, vector<1x128xf32>
    %8 = vector.broadcast %7 : vector<1x128xf32> to vector<16x128xf32>
    %9 = arith.addf %6, %8 : vector<16x128xf32>
    %cst_7 = arith.constant 0.000000e+00 : f32
    %10 = vector.broadcast %cst_7 : f32 to vector<16x128xf32>
    %11 = arith.maximumf %9, %10 : vector<16x128xf32>
    %12 = arith.truncf %11 : vector<16x128xf32> to vector<16x128xbf16>
    %c0_8 = arith.constant 0 : index
    %c0_9 = arith.constant 0 : index
    %13 = vector.load %arg3[%c0_8, %c0_9] : memref<128x128xbf16, #tpu.memory_space<vmem>>, vector<128x128xbf16>
    %cst_10 = arith.constant dense<0.000000e+00> : vector<16x128xf32>
    %14 = tpu.matmul %12, %13, %cst_10 {dimension_numbers = #tpu.dot_dimension_numbers<[1], [0], [0], [1], [0, 0, 1, 1], [], []>} : vector<16x128xbf16>, vector<128x128xbf16>, vector<16x128xf32> -> vector<16x128xf32>
    %c2 = arith.constant 2 : index
    %c0_11 = arith.constant 0 : index
    %15 = vector.load %arg4[%c2, %c0_11] : memref<3x128xf32, #tpu.memory_space<vmem>>, vector<1x128xf32>
    %16 = vector.broadcast %15 : vector<1x128xf32> to vector<16x128xf32>
    %17 = arith.addf %14, %16 : vector<16x128xf32>
    %18 = arith.truncf %17 : vector<16x128xf32> to vector<16x128xbf16>
    %19 = vector.shape_cast %18 : vector<16x128xbf16> to vector<1x16x128xbf16>
    %c0_12 = arith.constant 0 : index
    %c0_13 = arith.constant 0 : index
    %c0_14 = arith.constant 0 : index
    %20 = vector.load %arg5[%c0_12, %c0_13, %c0_14] : memref<1x16x128xbf16, #tpu.memory_space<vmem>>, vector<1x16x128xbf16>
    tpu.vector_store %arg5[%c0_12, %c0_13, %c0_14], %19 {strides = array<i32>} : memref<1x16x128xbf16, #tpu.memory_space<vmem>>, vector<1x16x128xbf16>,
    return
  }
  func.func @transform_0(%arg0: i32) -> (i32, i32, i32) {
    %c0_i32 = arith.constant 0 : i32
    %c0_i32_0 = arith.constant 0 : i32
    %c0_i32_1 = arith.constant 0 : i32
    return %arg0, %c0_i32, %c0_i32_0 : i32, i32, i32
  }
  func.func @transform_1(%arg0: i32) -> (i32, i32) {
    %c0_i32 = arith.constant 0 : i32
    %c0_i32_0 = arith.constant 0 : i32
    %c0_i32_1 = arith.constant 0 : i32
    return %c0_i32, %c0_i32_0 : i32, i32
  }
  func.func @transform_2(%arg0: i32) -> (i32, i32) {
    %c0_i32 = arith.constant 0 : i32
    %c0_i32_0 = arith.constant 0 : i32
    %c0_i32_1 = arith.constant 0 : i32
    return %c0_i32, %c0_i32_0 : i32, i32
  }
  func.func @transform_3(%arg0: i32) -> (i32, i32) {
    %c0_i32 = arith.constant 0 : i32
    %c0_i32_0 = arith.constant 0 : i32
    %c0_i32_1 = arith.constant 0 : i32
    return %c0_i32, %c0_i32_0 : i32, i32
  }
  func.func @transform_4(%arg0: i32) -> (i32, i32, i32) {
    %c0_i32 = arith.constant 0 : i32
    %c0_i32_0 = arith.constant 0 : i32
    %c0_i32_1 = arith.constant 0 : i32
    return %arg0, %c0_i32, %c0_i32_0 : i32, i32, i32
  }
}

</mosaic_0001>

<llo_original>
// kernel: tpu_custom_call.1
$region0: #{tpu_custom_call.1}
  #allocation0 [shape = 'u32[]', space=smem, size = 0x4, offset = 0x4, fixed_abs, tag = 'smem constant byte address 0x4 - core index']
  #allocation1 [shape = 'u32[144,128]{1,0:T(1,128)}', space=vmem, size = 0x12000, scoped, tag = 'internal scratch']
  %s0 = inlined_call_operand.vmem [shape: bf16[2,16,12], index: 0, kind: input, shape index: {}]
  %s1 = inlined_call_operand.vmem [shape: bf16[12,128], index: 1, kind: input, shape index: {}]
  %s2 = inlined_call_operand.hbm [shape: bf16[128,128], index: 2, kind: input, shape index: {}]
  %s3 = inlined_call_operand.vmem [shape: f32[3,128], index: 3, kind: input, shape index: {}]
  %s4 = inlined_call_operand.hbm [shape: bf16[2,16,128], index: 4, kind: output, shape index: {}]
  %s5 = sld [smem:[#allocation0]]
  $region53: #{tpu_custom_call.1} parent=0
    _
  %s7 = ssub.s32 1, %s5
  %s8 = scalar_select 0, %s7, %s5
  $region1: #{tpu_custom_call.1} parent=0
    #allocation2 [shape = 'u8[32768]{0}', space=vmem, size = 0x8000, scoped, tag = 'input window, operand 2, single buffered']
    #allocation3 [shape = 's32[2]{0}', space=sflag, size = 0x8, scoped, tag = 'scoped memory for tpu_custom_call.1']
    #allocation4 [shape = 's32[2]{0}', space=sflag, size = 0x8, scoped, tag = 'scoped memory for tpu_custom_call.1']
    #allocation5 [shape = 'u8[8192]{0}', space=vmem, size = 0x2000, scoped, tag = 'output window, operand 0']
    %9 = vsyncpa [#allocation3], 0
    %10 = vsyncpa [#allocation4], 0
    %s11 = scalar_lea.sflag [#allocation4], 1
    %12 = vsyncpa %s11, 0
    loop: start=0, step=1, limit=4
    $region2: #{tpu_custom_call.1} parent=1 // loop_pre_header
      _
    $region3: #{tpu_custom_call.1} parent=1 // loop_header
      %s14 = sphi 0, %s18
      %p15 = scmp.ge.s32.totalorder %s14, 4
      %s24 = sphi 0, %s26
      %s27 = sphi 0, %s24
      %s28 = sphi 0, %s27
      %s44 = sphi 0, %s28
      %s48 = sphi 0, %s48
      %s50 = sphi 0, %s48
      %s51 = sphi 0, %s50
      %s65 = sphi 0, %s51
      %s69 = sphi 0, %s69
      %s71 = sphi 0, %s69
      %s72 = sphi 0, %s71
      %s86 = sphi 0, %s72
      %s90 = sphi 0, %s90
      %s92 = sphi 0, %s90
      %s93 = sphi 0, %s92
      %s107 = sphi 0, %s93
      %s113 = sphi 0, %s115
      %s116 = sphi 0, %s113
      %s117 = sphi 0, %s116
      %s133 = sphi 0, %s117
    $region4: #{tpu_custom_call.1} parent=1 // loop_header_branch
      %17 = sbr.rel (%p15) target = $region8
    $region5: #{tpu_custom_call.1} parent=1 // loop_body
      %s19 = ssub.s32 %s14, 1
      %s20 = ssub.s32 %s14, 2
      %s21 = sadd.s32 %s14, 1
      %s22 = ssub.s32 %s14, %s21
      %p23 = scmp.eq.s32.totalorder %s22, 0
      %s25 = sadd.s32 %s24, 1
      %s26 = scalar_select %p23, %s24, %s25
      %p29 = pneg %p23
      %p30 = scmp.eq.s32.totalorder %s14, 1
      %p31 = por %p29, %p30
      %p32 = scmp.ne.s32.totalorder %s24, %s27
      %p33 = scmp.eq.s32.totalorder %s14, 0
      %p34 = por %p32, %p33
      %p35 = scmp.ne.s32.totalorder %s24, %s27
      %p36 = scmp.eq.s32.totalorder %s19, 1
      %p37 = por %p35, %p36
      %p38 = scmp.ne.s32.totalorder %s27, %s28
      %p39 = scmp.eq.s32.totalorder %s19, 0
      %p40 = por %p38, %p39
      %p41 = scmp.ne.s32.totalorder %s27, %s28
      %p42 = scmp.eq.s32.totalorder %s20, 1
      %p43 = por %p41, %p42
      %p45 = scmp.ne.s32.totalorder %s28, %s44
      %p46 = scmp.eq.s32.totalorder %s20, 0
      %p47 = por %p45, %p46
      %s49 = sadd.s32 %s48, 1
      %p52 = scmp.eq.s32.totalorder %s14, 1
      %p53 = scmp.ne.s32.totalorder %s48, %s50
      %p54 = scmp.eq.s32.totalorder %s14, 0
      %p55 = por %p53, %p54
      %p56 = scmp.ne.s32.totalorder %s48, %s50
      %p57 = scmp.eq.s32.totalorder %s19, 1
      %p58 = por %p56, %p57
      %p59 = scmp.ne.s32.totalorder %s50, %s51
      %p60 = scmp.eq.s32.totalorder %s19, 0
      %p61 = por %p59, %p60
      %p62 = scmp.ne.s32.totalorder %s50, %s51
      %p63 = scmp.eq.s32.totalorder %s20, 1
      %p64 = por %p62, %p63
      %p66 = scmp.ne.s32.totalorder %s51, %s65
      %p67 = scmp.eq.s32.totalorder %s20, 0
      %p68 = por %p66, %p67
      %s70 = sadd.s32 %s69, 1
      %p73 = scmp.eq.s32.totalorder %s14, 1
      %p74 = scmp.ne.s32.totalorder %s69, %s71
      %p75 = scmp.eq.s32.totalorder %s14, 0
      %p76 = por %p74, %p75
      %p77 = scmp.ne.s32.totalorder %s69, %s71
      %p78 = scmp.eq.s32.totalorder %s19, 1
      %p79 = por %p77, %p78
      %p80 = scmp.ne.s32.totalorder %s71, %s72
      %p81 = scmp.eq.s32.totalorder %s19, 0
      %p82 = por %p80, %p81
      %p83 = scmp.ne.s32.totalorder %s71, %s72
      %p84 = scmp.eq.s32.totalorder %s20, 1
      %p85 = por %p83, %p84
      %p87 = scmp.ne.s32.totalorder %s72, %s86
      %p88 = scmp.eq.s32.totalorder %s20, 0
      %p89 = por %p87, %p88
      %s91 = sadd.s32 %s90, 1
      %p94 = scmp.eq.s32.totalorder %s14, 1
      %p95 = scmp.ne.s32.totalorder %s90, %s92
      %p96 = scmp.eq.s32.totalorder %s14, 0
      %p97 = por %p95, %p96
      %p98 = scmp.ne.s32.totalorder %s90, %s92
      %p99 = scmp.eq.s32.totalorder %s19, 1
      %p100 = por %p98, %p99
      %p101 = scmp.ne.s32.totalorder %s92, %s93
      %p102 = scmp.eq.s32.totalorder %s19, 0
      %p103 = por %p101, %p102
      %p104 = scmp.ne.s32.totalorder %s92, %s93
      %p105 = scmp.eq.s32.totalorder %s20, 1
      %p106 = por %p104, %p105
      %p108 = scmp.ne.s32.totalorder %s93, %s107
      %p109 = scmp.eq.s32.totalorder %s20, 0
      %p110 = por %p108, %p109
      %s111 = ssub.s32 %s14, %s21
      %p112 = scmp.eq.s32.totalorder %s111, 0
      %s114 = sadd.s32 %s113, 1
      %s115 = scalar_select %p112, %s113, %s114
      %p118 = pneg %p112
      %p119 = scmp.eq.s32.totalorder %s14, 1
      %p120 = por %p118, %p119
      %p121 = scmp.ne.s32.totalorder %s113, %s116
      %p122 = scmp.eq.s32.totalorder %s14, 0
      %p123 = por %p121, %p122
      %p124 = scmp.ne.s32.totalorder %s113, %s116
      %p125 = scmp.eq.s32.totalorder %s19, 1
      %p126 = por %p124, %p125
      %p127 = scmp.ne.s32.totalorder %s116, %s117
      %p128 = scmp.eq.s32.totalorder %s19, 0
      %p129 = por %p127, %p128
      %p130 = scmp.ne.s32.totalorder %s116, %s117
      %p131 = scmp.eq.s32.totalorder %s20, 1
      %p132 = por %p130, %p131
      %p134 = scmp.ne.s32.totalorder %s117, %s133
      %p135 = scmp.eq.s32.totalorder %s20, 0
      %p136 = por %p134, %p135
      %p137 = scmp.le.s32.totalorder 1, %s14
      %p138 = scmp.lt.s32.totalorder %s14, 3
      %p139 = pnand %p137, %p138
      %p140 = pneg %p139
      // Predicated region
      $region9: #{tpu_custom_call.1} parent=5 // pred_check
        _
      $region10: #{tpu_custom_call.1} parent=5 // pred_check_branch
        %142 = sbr.rel (%p139) target = $region12
      $region11: #{tpu_custom_call.1} parent=5 // pred_region
        %s143 = ssub.s32 %s14, 1
        // Predicated region
        $region13: #{tpu_custom_call.1} parent=11 // pred_check
          %p144 = pneg %p61
        $region14: #{tpu_custom_call.1} parent=11 // pred_check_branch
          %146 = sbr.rel (%p144) target = $region16
        $region15: #{tpu_custom_call.1} parent=11 // pred_region
          _
        $region16: #{tpu_custom_call.1} parent=11 // pred_fallthru
          _
        // Predicated region
        $region17: #{tpu_custom_call.1} parent=11 // pred_check
          %p147 = pneg %p82
        $region18: #{tpu_custom_call.1} parent=11 // pred_check_branch
          %149 = sbr.rel (%p147) target = $region20
        $region19: #{tpu_custom_call.1} parent=11 // pred_region
          %s151 = ssub.s32 1024, 1024
          %152 = vsyncadd [#allocation3], %s151
          %s153 = sshll.u32 [#allocation2], 4
          %s154 = int_to_ptr.vmem [resolvable:$true] %s153
          %159 = dma.hbm_to_vmem [thread:$0]  %s2, 1024, %s154, [#allocation3], 64, 64, 4
        $region20: #{tpu_custom_call.1} parent=11 // pred_fallthru
          _
        // Predicated region
        $region21: #{tpu_custom_call.1} parent=11 // pred_check
          %p160 = pneg %p103
        $region22: #{tpu_custom_call.1} parent=11 // pred_check_branch
          %162 = sbr.rel (%p160) target = $region24
        $region23: #{tpu_custom_call.1} parent=11 // pred_region
          _
        $region24: #{tpu_custom_call.1} parent=11 // pred_fallthru
          _
      $region12: #{tpu_custom_call.1} parent=5 // pred_fallthru
        _
      %p163 = scmp.lt.s32.totalorder %s14, 2
      // Predicated region
      $region25: #{tpu_custom_call.1} parent=5 // pred_check
        %p164 = pneg %p163
      $region26: #{tpu_custom_call.1} parent=5 // pred_check_branch
        %166 = sbr.rel (%p164) target = $region28
      $region27: #{tpu_custom_call.1} parent=5 // pred_region
        // Predicated region
        $region29: #{tpu_custom_call.1} parent=27 // pred_check
          %p167 = pneg %p34
        $region30: #{tpu_custom_call.1} parent=27 // pred_check_branch
          %169 = sbr.rel (%p167) target = $region32
        $region31: #{tpu_custom_call.1} parent=27 // pred_region
          %p170 = scmp.lt.s32.totalorder %s14, 1
          %s171 = scalar_select %p170, %s14, 1
          %s172 = smul.addr %s171, 2
          %s173 = smul.addr %s172, 4
          %s174 = scalar_lea.vmem %s0, %s173
        $region32: #{tpu_custom_call.1} parent=27 // pred_fallthru
          _
      $region28: #{tpu_custom_call.1} parent=5 // pred_fallthru
        _
      %p175 = scmp.le.s32.totalorder 1, %s14
      %p176 = scmp.lt.s32.totalorder %s14, 3
      %p177 = pnand %p175, %p176
      %p178 = pneg %p177
      // Predicated region
      $region33: #{tpu_custom_call.1} parent=5 // pred_check
        _
      $region34: #{tpu_custom_call.1} parent=5 // pred_check_branch
        %180 = sbr.rel (%p177) target = $region36
      $region35: #{tpu_custom_call.1} parent=5 // pred_region
        %s181 = ssub.s32 %s14, 1
        // Predicated region
        $region37: #{tpu_custom_call.1} parent=35 // pred_check
          %p182 = pneg %p82
        $region38: #{tpu_custom_call.1} parent=35 // pred_check_branch
          %184 = sbr.rel (%p182) target = $region40
        $region39: #{tpu_custom_call.1} parent=35 // pred_region
          %185 = dma.done [#allocation3], 1024
        $region40: #{tpu_custom_call.1} parent=35 // pred_fallthru
          _
        %p186 = scmp.lt.s32.totalorder %s19, 1
        %s187 = scalar_select %p186, %s19, 1
        %s188 = smul.addr %s187, 2
        %s189 = smul.addr %s188, 4
        %s190 = scalar_lea.vmem %s0, %s189
        %p191 = pneg %p40
        %p192 = pneg %p37
        %p193 = pneg %p61
        %p194 = pneg %p58
        %p195 = pneg %p82
        %p196 = pneg %p79
        %p197 = pneg %p103
        %p198 = pneg %p100
        %p199 = pneg %p129
        %p200 = pneg %p126
        %s201 = sand.u32 %s116, 1
        %s202 = scalar_lea.sflag [#allocation4], %s201
        %s203 = sand.u32 %s116, 1
        %s204 = smul.addr %s203, 8
        %s205 = scalar_lea.vmem [#allocation5], %s204
        %p206 = scmp.lt.s32.totalorder %s19, 1
        %s207 = scalar_select %p206, %s19, 1
        %s208 = smul.addr %s207, 2
        %s209 = smul.addr %s208, 4
        %s210 = scalar_lea.vmem %s0, %s209
        %v212 = vld [vmem:[%s210] sm:$0xf]
        %v213 = vld [vmem:[%s210 + $0x4] sm:$0xf]
        %v214 = vld [vmem:[%s1] sm:$0xf]
        %v215 = vld [vmem:[%s1 + $0x4] sm:$0x3]
        %v218 = vunpack.c.l.b16 %v212
        %v219 = vunpack.c.l.b16 %v213
        %v220 = vpack.c.b16 %v219, %v218
        %v223 = vunpack.c.l.b16 %v214
        %v224 = vunpack.c.l.b16 %v215
        %v225 = vpack.c.b16 %v224, %v223
        %vm226 = vcmask 97280
        %v228 = vsel %vm226, %v220, 0
        %vm230 = vcmask 1045504
        %v232 = vsel %vm230, %v225, 0
        %234 = vmatprep.subr.bf16.mxu0 0
        %235 = vmatpush1.bf16.msra.mxu0 0
        %236 = vmatprep.subr.bf16.mxu0 0
        %237 = vmatpush1.bf16.msra.mxu0 0
        %238 = vmatprep.subr.bf16.mxu0 0
        %239 = vmatpush1.bf16.msra.mxu0 0
        %240 = vmatprep.subr.bf16.mxu0 0
        %241 = vmatpush1.bf16.msra.mxu0 0
        %242 = vmatprep.subr.bf16.mxu0 0
        %243 = vmatpush1.bf16.msra.mxu0 0
        %244 = vmatprep.subr.bf16.mxu0 0
        %245 = vmatpush1.bf16.msra.mxu0 0
        %246 = vmatprep.subr.bf16.mxu0 0
        %247 = vmatpush1.bf16.msra.mxu0 0
        %248 = vmatprep.subr.bf16.mxu0 0
        %249 = vmatpush1.bf16.msra.mxu0 %v232
        %250 = vmatprep.subr.bf16.mxu0 0
        %251 = vmatpush2.bf16.msra.mxu0 0
        %252 = vmatprep.subr.bf16.mxu0 0
        %253 = vmatpush2.bf16.msra.mxu0 0
        %254 = vmatprep.subr.bf16.mxu0 0
        %255 = vmatpush2.bf16.msra.mxu0 0
        %256 = vmatprep.subr.bf16.mxu0 0
        %257 = vmatpush2.bf16.msra.mxu0 0
        %258 = vmatprep.subr.bf16.mxu0 0
        %259 = vmatpush2.bf16.msra.mxu0 0
        %260 = vmatprep.subr.bf16.mxu0 0
        %261 = vmatpush2.bf16.msra.mxu0 0
        %262 = vmatprep.subr.bf16.mxu0 0
        %263 = vmatpush2.bf16.msra.mxu0 0
        %264 = vmatprep.subr.bf16.mxu0 0
        %265 = vmatpush2.bf16.msra.mxu0 0
        %266 = vmatprep.mubr.bf16.mxu0 0
        %267 = vmatmul.mubr.bf16.gmra.mxu0 %v228
        %v268 = vpop.f32.mrf.mxu0
        %v269 = vadd.f32 0.0, %v268
        %v270 = vpop.f32.mrf.mxu0
        %v271 = vpop.f32.mrf.mxu0
        %v272 = vadd.f32 0.0, %v271
        %v273 = vpop.f32.mrf.mxu0
        %274 = vdwg.mxu0
        %v275 = vld [vmem:[%s3] sm:$0x1]
        %v276 = vlaneseq
        %v277 = vshrl.u32 %v276, 7
        %v278 = vsub.s32 0, %v277
        %v279 = vrot.slane %v275, %v278
        %v280 = vmul.f32 %v269, %v279
        %v281 = vmul.f32 %v272, %v279
        %v282 = vld [vmem:[%s3 + $0x1] sm:$0x1]
        %v283 = vlaneseq
        %v284 = vshrl.u32 %v283, 7
        %v285 = vsub.s32 0, %v284
        %v286 = vrot.slane %v282, %v285
        %v287 = vadd.f32 %v280, %v286
        %v288 = vadd.f32 %v281, %v286
        %v289 = vmax.f32 %v287, 0.0
        %v290 = vmax.f32 %v288, 0.0
        %v291 = vpack.c.bf16 %v290, %v289
        %v292 = vld [vmem:[#allocation2] sm:$0xf]
        %v293 = vld [vmem:[#allocation2 + $0x4] sm:$0xf]
        %v294 = vld [vmem:[#allocation2 + $0x8] sm:$0xf]
        %v295 = vld [vmem:[#allocation2 + $0xc] sm:$0xf]
        %v296 = vld [vmem:[#allocation2 + $0x10] sm:$0xf]
        %v297 = vld [vmem:[#allocation2 + $0x14] sm:$0xf]
        %v298 = vld [vmem:[#allocation2 + $0x18] sm:$0xf]
        %v299 = vld [vmem:[#allocation2 + $0x1c] sm:$0xf]
        %v300 = vld [vmem:[#allocation2 + $0x20] sm:$0xf]
        %v301 = vld [vmem:[#allocation2 + $0x24] sm:$0xf]
        %v302 = vld [vmem:[#allocation2 + $0x28] sm:$0xf]
        %v303 = vld [vmem:[#allocation2 + $0x2c] sm:$0xf]
        %v304 = vld [vmem:[#allocation2 + $0x30] sm:$0xf]
        %v305 = vld [vmem:[#allocation2 + $0x34] sm:$0xf]
        %v306 = vld [vmem:[#allocation2 + $0x38] sm:$0xf]
        %v307 = vld [vmem:[#allocation2 + $0x3c] sm:$0xf]
        %v308 = vld [vmem:[%s3 + $0x2] sm:$0x1]
        %v309 = vlaneseq
        %v310 = vshrl.u32 %v309, 7
        %v311 = vsub.s32 0, %v310
        %v312 = vrot.slane %v308, %v311
        %v329 = vunpack.c.l.b16 %v292
        %v330 = vunpack.c.l.b16 %v293
        %v331 = vunpack.c.l.b16 %v294
        %v332 = vunpack.c.l.b16 %v295
        %v333 = vunpack.c.l.b16 %v296
        %v334 = vunpack.c.l.b16 %v297
        %v335 = vunpack.c.l.b16 %v298
        %v336 = vunpack.c.l.b16 %v299
        %v337 = vunpack.c.l.b16 %v300
        %v338 = vunpack.c.l.b16 %v301
        %v339 = vunpack.c.l.b16 %v302
        %v340 = vunpack.c.l.b16 %v303
        %v341 = vunpack.c.l.b16 %v304
        %v342 = vunpack.c.l.b16 %v305
        %v343 = vunpack.c.l.b16 %v306
        %v344 = vunpack.c.l.b16 %v307
        %v345 = vpack.c.b16 %v330, %v329
        %v346 = vpack.c.b16 %v332, %v331
        %v347 = vpack.c.b16 %v334, %v333
        %v348 = vpack.c.b16 %v336, %v335
        %v349 = vpack.c.b16 %v338, %v337
        %v350 = vpack.c.b16 %v340, %v339
        %v351 = vpack.c.b16 %v342, %v341
        %v352 = vpack.c.b16 %v344, %v343
        %361 = vmatprep.subr.bf16.mxu0 0
        %362 = vmatpush1.bf16.msra.mxu0 %v352
        %363 = vmatprep.subr.bf16.mxu0 0
        %364 = vmatpush1.bf16.msra.mxu0 %v351
        %365 = vmatprep.subr.bf16.mxu0 0
        %366 = vmatpush1.bf16.msra.mxu0 %v350
        %367 = vmatprep.subr.bf16.mxu0 0
        %368 = vmatpush1.bf16.msra.mxu0 %v349
        %369 = vmatprep.subr.bf16.mxu0 0
        %370 = vmatpush1.bf16.msra.mxu0 %v348
        %371 = vmatprep.subr.bf16.mxu0 0
        %372 = vmatpush1.bf16.msra.mxu0 %v347
        %373 = vmatprep.subr.bf16.mxu0 0
        %374 = vmatpush1.bf16.msra.mxu0 %v346
        %375 = vmatprep.subr.bf16.mxu0 0
        %376 = vmatpush1.bf16.msra.mxu0 %v345
        %377 = vmatprep.subr.bf16.mxu0 0
        %378 = vmatpush2.bf16.msra.mxu0 0
        %379 = vmatprep.subr.bf16.mxu0 0
        %380 = vmatpush2.bf16.msra.mxu0 0
        %381 = vmatprep.subr.bf16.mxu0 0
        %382 = vmatpush2.bf16.msra.mxu0 0
        %383 = vmatprep.subr.bf16.mxu0 0
        %384 = vmatpush2.bf16.msra.mxu0 0
        %385 = vmatprep.subr.bf16.mxu0 0
        %386 = vmatpush2.bf16.msra.mxu0 0
        %387 = vmatprep.subr.bf16.mxu0 0
        %388 = vmatpush2.bf16.msra.mxu0 0
        %389 = vmatprep.subr.bf16.mxu0 0
        %390 = vmatpush2.bf16.msra.mxu0 0
        %391 = vmatprep.subr.bf16.mxu0 0
        %392 = vmatpush2.bf16.msra.mxu0 0
        %393 = vmatprep.mubr.bf16.mxu0 0
        %394 = vmatmul.mubr.bf16.gmra.mxu0 %v291
        %v395 = vpop.f32.mrf.mxu0
        %v396 = vadd.f32 %v312, %v395
        %v397 = vpop.f32.mrf.mxu0
        %v398 = vpop.f32.mrf.mxu0
        %v399 = vadd.f32 %v312, %v398
        %v400 = vpop.f32.mrf.mxu0
        %401 = vdwg.mxu0
        %v402 = vpack.c.bf16 %v399, %v396
        %v404 = vunpack.c.l.b16 %v402
        %v405 = vunpack.c.h.b16 %v402
        %v406 = vpack.c.b16 %v404, %v404
        %v407 = vpack.c.b16 %v405, %v405
        %410 = vst [vmem:[%s205] sm:$0xf] %v406
        %411 = vst [vmem:[%s205 + $0x4] sm:$0xf] %v407
        %s412 = sand.u32 %s116, 1
        %s413 = scalar_lea.sflag [#allocation4], %s412
        %s414 = sand.u32 %s116, 1
        %s415 = smul.addr %s414, 8
        %s416 = scalar_lea.vmem [#allocation5], %s415
        // Predicated region
        $region41: #{tpu_custom_call.1} parent=35 // pred_check
          %p417 = pneg %p126
        $region42: #{tpu_custom_call.1} parent=35 // pred_check_branch
          %419 = sbr.rel (%p417) target = $region44
        $region43: #{tpu_custom_call.1} parent=35 // pred_region
          %s421 = ssub.s32 128, 128
          %422 = vsyncadd %s413, %s421
          %s423 = smul.addr %s19, 2
          %s424 = smul.addr %s423, 64
          %s425 = scalar_lea.hbm %s4, %s424
          %s426 = sshll.u32 %s416, 4
          %s427 = int_to_ptr.vmem [resolvable:$true] %s426
          %432 = dma.vmem_to_hbm [thread:$0]  %s427, 128, %s425, %s413, 64, 64, 4
        $region44: #{tpu_custom_call.1} parent=35 // pred_fallthru
          _
      $region36: #{tpu_custom_call.1} parent=5 // pred_fallthru
        _
      %p433 = scmp.le.s32.totalorder 2, %s14
      // Predicated region
      $region45: #{tpu_custom_call.1} parent=5 // pred_check
        %p434 = pneg %p433
      $region46: #{tpu_custom_call.1} parent=5 // pred_check_branch
        %436 = sbr.rel (%p434) target = $region48
      $region47: #{tpu_custom_call.1} parent=5 // pred_region
        %s437 = ssub.s32 %s14, 2
        // Predicated region
        $region49: #{tpu_custom_call.1} parent=47 // pred_check
          %p438 = pneg %p132
        $region50: #{tpu_custom_call.1} parent=47 // pred_check_branch
          %440 = sbr.rel (%p438) target = $region52
        $region51: #{tpu_custom_call.1} parent=47 // pred_region
          %s441 = sand.u32 %s117, 1
          %s442 = scalar_lea.sflag [#allocation4], %s441
          %s443 = sand.u32 %s117, 1
          %s444 = smul.addr %s443, 8
          %s445 = scalar_lea.vmem [#allocation5], %s444
          %446 = dma.done %s442, 128
        $region52: #{tpu_custom_call.1} parent=47 // pred_fallthru
          _
      $region48: #{tpu_custom_call.1} parent=5 // pred_fallthru
        _
    $region6: #{tpu_custom_call.1} parent=1 // loop_footer
      %s18 = sadd.s32 1, %s14
    $region7: #{tpu_custom_call.1} parent=1 // loop_footer_branch
      %13 = sbr.rel target = $region3
    $region8: #{tpu_custom_call.1} parent=1 // loop_exit
      _
    %447 = vsyncpa [#allocation3], 1
    %s448 = scalar_lea.sflag [#allocation3], 1
    %449 = vsyncpa %s448, 1
    %450 = vsyncpa [#allocation4], 1
    %s451 = scalar_lea.sflag [#allocation4], 1
    %452 = vsyncpa %s451, 1

</llo_original>
